<compile_context>
chip_gen: v5e
topology: v5e:2x2
jax: 0.10.0
libtpu: 0.0.40
codegen_flags: <defaults>
</compile_context>

<pallas_src>
import functools

import jax
import jax.numpy as jnp
from jax.experimental import pallas as pl
from jax.experimental.pallas import tpu as pltpu


def _round_up(x, m):
    return (x + m - 1) // m * m


def _conv_relu_kernel(x_ref, w_ref, o_ref, *, kh, kw, wp, tile_l):
    # x_ref: (1, Cin, tile_l + halo)  overlapped flat window for this grid step
    # w_ref: (Cout, KH*KW*Cin)        folded weights (constant index_map -> resident)
    # o_ref: (Cout, tile_l)           lane-dense output tile
    x_win = x_ref[0]                                   # (Cin, tile_l + halo)
    taps = [x_win[:, di * wp + dj: di * wp + dj + tile_l]
            for di in range(kh) for dj in range(kw)]   # KH*KW x (Cin, tile_l)
    patches = jnp.concatenate(taps, axis=0)            # (KH*KW*Cin, tile_l)
    acc = jnp.dot(w_ref[...], patches, preferred_element_type=jnp.float32)
    o_ref[...] = jnp.maximum(acc, 0.0).astype(o_ref.dtype)


def cnn_block_forward(x_nchw, weight_oihw, *, stride=1, padding=1,
                      tile_m=1024, compute_dtype=jnp.bfloat16):
    """Conv2d(bias=False) + ReLU, matching PyTorch semantics.

    x_nchw:      (N, Cin, H, W)
    weight_oihw: (Cout, Cin, KH, KW)   (PyTorch conv weight layout)
    returns:     (N, Cout, Hout, Wout) in x_nchw.dtype
    """
    n, cin, h, w = x_nchw.shape
    cout, cin_w, kh, kw = weight_oihw.shape
    assert cin == cin_w

    out_dtype = x_nchw.dtype
    cdt = compute_dtype if compute_dtype is not None else x_nchw.dtype

    hp, wp = h + 2 * padding, w + 2 * padding
    ho = (hp - kh) // stride + 1
    wo = (wp - kw) // stride + 1
    halo = (kh - 1) * wp + (kw - 1)
    l_dense = n * hp * wp                  # dense (stride-1) output positions
    k_total = kh * kw * cin

    # ---- tile selection: VMEM-aware (v7x 64 MiB phys / 32 MiB scoped) ------
    in_isz = jnp.dtype(cdt).itemsize
    out_isz = jnp.dtype(out_dtype).itemsize
    # approx VMEM bytes per output column of one pipelined step:
    #   2x buffered input window + folded-patch temporaries + f32 acc + 2x output
    per_col = (2 * cin * in_isz + 2 * k_total * in_isz
               + cout * 4 + 2 * cout * out_isz)
    vmem_budget = 16 << 20                 # headroom under the 32 MiB scoped limit
    tile_l = min(tile_m, max(128, (vmem_budget // per_col) // 128 * 128))
    tile_l = min(tile_l, _round_up(l_dense, 128))
    grid = pl.cdiv(l_dense, tile_l)
    # v7x has 2 TensorCores: prefer an even grid >= 2 on the "parallel" axis.
    if grid == 1 and l_dense > 256:
        tile_l = max(128, _round_up(pl.cdiv(l_dense, 2), 128))
        grid = pl.cdiv(l_dense, tile_l)
    elif grid > 1 and grid % 2 == 1:
        t2 = max(128, _round_up(pl.cdiv(l_dense, grid + 1), 128))
        if pl.cdiv(l_dense, t2) % 2 == 0:
            tile_l, grid = t2, pl.cdiv(l_dense, t2)
    win = tile_l + halo
    m_pad = grid * tile_l                  # only the last tile carries padding

    # ---- cheap layout pass: pad + NCHW -> (Cin, N*Hp*Wp) + halo windows ----
    x = x_nchw.astype(cdt)
    x = jnp.pad(x, ((0, 0), (0, 0), (padding, padding), (padding, padding)))
    x_flat = jnp.transpose(x, (1, 0, 2, 3)).reshape(cin, l_dense)
    x_flat = jnp.pad(x_flat, ((0, 0), (0, m_pad + halo - l_dense)))
    starts = jnp.arange(grid) * tile_l
    # overlapped windows (halo duplicated once): (grid, Cin, tile_l + halo)
    x_over = jax.vmap(
        lambda s: jax.lax.dynamic_slice(x_flat, (0, s), (cin, win)))(starts)

    # folded weights: (Cout, Cin, KH, KW) -> (Cout, KH, KW, Cin) -> (Cout, K)
    # column ordering (tap-major, Cin-minor) matches the in-kernel tap concat.
    w_folded = jnp.transpose(weight_oihw, (0, 2, 3, 1)).reshape(cout, k_total)
    w_folded = w_folded.astype(cdt)

    cost = pl.CostEstimate(
        flops=2 * m_pad * k_total * cout,
        transcendentals=0,
        bytes_accessed=(x_over.size * in_isz + w_folded.size * in_isz
                        + cout * m_pad * out_isz))

    kernel = functools.partial(_conv_relu_kernel,
                               kh=kh, kw=kw, wp=wp, tile_l=tile_l)
    out = pl.pallas_call(
        kernel,
        out_shape=jax.ShapeDtypeStruct((cout, m_pad), out_dtype),
        grid_spec=pltpu.PrefetchScalarGridSpec(
            num_scalar_prefetch=0,
            grid=(grid,),
            in_specs=[
                # one overlapped window per grid step (last two dims = full dims)
                pl.BlockSpec((1, cin, win), lambda g: (g, 0, 0)),
                # folded weights: constant index_map -> resident, no re-DMA
                pl.BlockSpec((cout, k_total), lambda g: (0, 0)),
            ],
            out_specs=pl.BlockSpec((cout, tile_l), lambda g: (0, g)),
        ),
        compiler_params=pltpu.CompilerParams(
            dimension_semantics=("parallel",),
            vmem_limit_bytes=32 * 1024 * 1024),
        cost_estimate=cost,
    )(x_over, w_folded)

    # dense result has the (N, Hp, Wp) spatial structure of the padded input;
    # the valid conv outputs sit in the [0:.., 0:..] corner; subsample for stride.
    out = out[:, :l_dense].reshape(cout, n, hp, wp)
    out = out[:, :, 0:(ho - 1) * stride + 1:stride, 0:(wo - 1) * stride + 1:stride]
    return jnp.transpose(out, (1, 0, 2, 3))


if __name__ == "__main__":
    # CNNBlock(in_channels=4, out_channels=8, kernel_size=3, stride=1, padding=1)
    N, CIN, H, W = 2, 4, 16, 16
    COUT, KH, KW = 8, 3, 3

    key = jax.random.PRNGKey(0)
    kx, kw_ = jax.random.split(key)
    x = jax.random.normal(kx, (N, CIN, H, W), dtype=jnp.float32)
    weight = jax.random.normal(kw_, (COUT, CIN, KH, KW), dtype=jnp.float32) * 0.1

    y = cnn_block_forward(x, weight, stride=1, padding=1)  # bf16 operands, f32 accum
    y = jax.block_until_ready(y)

    # reference check against XLA conv + relu (tolerance relaxed for bf16 operands)
    y_ref = jax.lax.conv_general_dilated(
        x, weight, window_strides=(1, 1), padding=((1, 1), (1, 1)),
        dimension_numbers=("NCHW", "OIHW", "NCHW"))
    y_ref = jnp.maximum(y_ref, 0.0)
    assert y.shape == (N, COUT, H, W)
    err = float(jnp.max(jnp.abs(y - y_ref)))
    assert jnp.allclose(y, y_ref, atol=2e-2, rtol=2e-2), err

    print("KERNEL_OK")
</pallas_src>

<mosaic_0001>
module attributes {stable_mosaic.version = 11 : i64} {
  func.func @_conv_relu_kernel(%arg0: i32, %arg1: memref<1x4x422xbf16, #tpu.memory_space<vmem>>, %arg2: memref<8x36xbf16, #tpu.memory_space<vmem>>, %arg3: memref<8x384xf32, #tpu.memory_space<vmem>>) attributes {dimension_semantics = [#tpu.dimension_semantics<parallel>], iteration_bounds = array<i64: 2>, scalar_prefetch = 0 : i64, scratch_operands = 0 : i64, tpu.core_type = #tpu.core_type<tc>, window_params = [{transform_indices = @transform_0, window_bounds = array<i64: 1, 4, 422>}, {pipeline_mode = #tpu.pipeline_mode<synchronous>, transform_indices = @transform_1, window_bounds = array<i64: 8, 36>}, {transform_indices = @transform_2, window_bounds = array<i64: 8, 384>}]} {
    %c0 = arith.constant 0 : index
    %c0_0 = arith.constant 0 : index
    %c0_1 = arith.constant 0 : index
    %0 = vector.load %arg1[%c0, %c0_0, %c0_1] : memref<1x4x422xbf16, #tpu.memory_space<vmem>>, vector<1x4x422xbf16>
    %1 = vector.shape_cast %0 : vector<1x4x422xbf16> to vector<4x422xbf16>
    %2 = vector.extract_strided_slice %1 {offsets = [0, 0], sizes = [4, 384], strides = [1, 1]} : vector<4x422xbf16> to vector<4x384xbf16>
    %3 = vector.extract_strided_slice %1 {offsets = [0, 1], sizes = [4, 384], strides = [1, 1]} : vector<4x422xbf16> to vector<4x384xbf16>
    %4 = vector.extract_strided_slice %1 {offsets = [0, 2], sizes = [4, 384], strides = [1, 1]} : vector<4x422xbf16> to vector<4x384xbf16>
    %5 = vector.extract_strided_slice %1 {offsets = [0, 18], sizes = [4, 384], strides = [1, 1]} : vector<4x422xbf16> to vector<4x384xbf16>
    %6 = vector.extract_strided_slice %1 {offsets = [0, 19], sizes = [4, 384], strides = [1, 1]} : vector<4x422xbf16> to vector<4x384xbf16>
    %7 = vector.extract_strided_slice %1 {offsets = [0, 20], sizes = [4, 384], strides = [1, 1]} : vector<4x422xbf16> to vector<4x384xbf16>
    %8 = vector.extract_strided_slice %1 {offsets = [0, 36], sizes = [4, 384], strides = [1, 1]} : vector<4x422xbf16> to vector<4x384xbf16>
    %9 = vector.extract_strided_slice %1 {offsets = [0, 37], sizes = [4, 384], strides = [1, 1]} : vector<4x422xbf16> to vector<4x384xbf16>
    %10 = vector.extract_strided_slice %1 {offsets = [0, 38], sizes = [4, 384], strides = [1, 1]} : vector<4x422xbf16> to vector<4x384xbf16>
    %11 = tpu.concatenate %2, %3, %4, %5, %6, %7, %8, %9, %10 in 0 : vector<4x384xbf16>, vector<4x384xbf16>, vector<4x384xbf16>, vector<4x384xbf16>, vector<4x384xbf16>, vector<4x384xbf16>, vector<4x384xbf16>, vector<4x384xbf16>, vector<4x384xbf16> -> vector<36x384xbf16>
    %c0_2 = arith.constant 0 : index
    %c0_3 = arith.constant 0 : index
    %12 = vector.load %arg2[%c0_2, %c0_3] : memref<8x36xbf16, #tpu.memory_space<vmem>>, vector<8x36xbf16>
    %cst = arith.constant dense<0.000000e+00> : vector<8x384xf32>
    %13 = tpu.matmul %12, %11, %cst {dimension_numbers = #tpu.dot_dimension_numbers<[1], [0], [0], [1], [0, 0, 1, 1], [], []>} : vector<8x36xbf16>, vector<36x384xbf16>, vector<8x384xf32> -> vector<8x384xf32>
    %cst_4 = arith.constant 0.000000e+00 : f32
    %14 = vector.broadcast %cst_4 : f32 to vector<8x384xf32>
    %15 = arith.maximumf %13, %14 : vector<8x384xf32>
    %c0_5 = arith.constant 0 : index
    %c0_6 = arith.constant 0 : index
    %16 = vector.load %arg3[%c0_5, %c0_6] : memref<8x384xf32, #tpu.memory_space<vmem>>, vector<8x384xf32>
    tpu.vector_store %arg3[%c0_5, %c0_6], %15 {strides = array<i32>} : memref<8x384xf32, #tpu.memory_space<vmem>>, vector<8x384xf32>,
    return
  }
  func.func @transform_0(%arg0: i32) -> (i32, i32, i32) {
    %c0_i32 = arith.constant 0 : i32
    %c0_i32_0 = arith.constant 0 : i32
    %c0_i32_1 = arith.constant 0 : i32
    return %arg0, %c0_i32, %c0_i32_0 : i32, i32, i32
  }
  func.func @transform_1(%arg0: i32) -> (i32, i32) {
    %c0_i32 = arith.constant 0 : i32
    %c0_i32_0 = arith.constant 0 : i32
    %c0_i32_1 = arith.constant 0 : i32
    return %c0_i32, %c0_i32_0 : i32, i32
  }
  func.func @transform_2(%arg0: i32) -> (i32, i32) {
    %c0_i32 = arith.constant 0 : i32
    %c0_i32_0 = arith.constant 0 : i32
    return %c0_i32, %arg0 : i32, i32
  }
}

</mosaic_0001>

<llo_original>
// kernel: tpu_custom_call.1
$region0: #{tpu_custom_call.1}
  #allocation0 [shape = 'u32[]', space=smem, size = 0x4, offset = 0x4, fixed_abs, tag = 'smem constant byte address 0x4 - core index']
  #allocation1 [shape = 'u32[72,128]{1,0:T(1,128)}', space=vmem, size = 0x9000, scoped, tag = 'internal scratch']
  %s0 = inlined_call_operand.hbm [shape: bf16[2,4,422], index: 0, kind: input, shape index: {}]
  %s1 = inlined_call_operand.hbm [shape: bf16[8,36], index: 1, kind: input, shape index: {}]
  %s2 = inlined_call_operand.hbm [shape: f32[8,768], index: 2, kind: output, shape index: {}]
  %s3 = sld [smem:[#allocation0]]
  $region49: #{tpu_custom_call.1} parent=0
    _
  %s5 = ssub.s32 1, %s3
  %s6 = scalar_select 0, %s5, %s3
  $region1: #{tpu_custom_call.1} parent=0
    #allocation2 [shape = 'u8[8192]{0}', space=vmem, size = 0x2000, scoped, tag = 'input window, operand 0']
    #allocation3 [shape = 's32[2]{0}', space=sflag, size = 0x8, scoped, tag = 'scoped memory for tpu_custom_call.1']
    #allocation4 [shape = 's32[2]{0}', space=sflag, size = 0x8, scoped, tag = 'scoped memory for tpu_custom_call.1']
    #allocation5 [shape = 'u8[2048]{0}', space=vmem, size = 0x800, scoped, tag = 'input window, operand 1, single buffered']
    #allocation6 [shape = 's32[1]{0}', space=sflag, size = 0x4, scoped, tag = 'scoped memory for tpu_custom_call.1']
    #allocation7 [shape = 'u8[24576]{0}', space=vmem, size = 0x6000, scoped, tag = 'output window, operand 0']
    %7 = vsyncpa [#allocation3], 0
    %s8 = scalar_lea.sflag [#allocation3], 1
    %9 = vsyncpa %s8, 0
    %10 = vsyncpa [#allocation6], 0
    %11 = vsyncpa [#allocation4], 0
    %s12 = scalar_lea.sflag [#allocation4], 1
    %13 = vsyncpa %s12, 0
    loop: start=0, step=1, limit=4
    $region2: #{tpu_custom_call.1} parent=1 // loop_pre_header
      _
    $region3: #{tpu_custom_call.1} parent=1 // loop_header
      %s15 = sphi 0, %s19
      %p16 = scmp.ge.s32.totalorder %s15, 4
      %s25 = sphi 0, %s27
      %s28 = sphi 0, %s25
      %s29 = sphi 0, %s28
      %s45 = sphi 0, %s29
      %s49 = sphi 0, %s49
      %s51 = sphi 0, %s49
      %s52 = sphi 0, %s51
      %s66 = sphi 0, %s52
      %s72 = sphi 0, %s74
      %s75 = sphi 0, %s72
      %s76 = sphi 0, %s75
      %s92 = sphi 0, %s76
    $region4: #{tpu_custom_call.1} parent=1 // loop_header_branch
      %18 = sbr.rel (%p16) target = $region8
    $region5: #{tpu_custom_call.1} parent=1 // loop_body
      %s20 = ssub.s32 %s15, 1
      %s21 = ssub.s32 %s15, 2
      %s22 = sadd.s32 %s15, 1
      %s23 = ssub.s32 %s15, %s22
      %p24 = scmp.eq.s32.totalorder %s23, 0
      %s26 = sadd.s32 %s25, 1
      %s27 = scalar_select %p24, %s25, %s26
      %p30 = pneg %p24
      %p31 = scmp.eq.s32.totalorder %s15, 1
      %p32 = por %p30, %p31
      %p33 = scmp.ne.s32.totalorder %s25, %s28
      %p34 = scmp.eq.s32.totalorder %s15, 0
      %p35 = por %p33, %p34
      %p36 = scmp.ne.s32.totalorder %s25, %s28
      %p37 = scmp.eq.s32.totalorder %s20, 1
      %p38 = por %p36, %p37
      %p39 = scmp.ne.s32.totalorder %s28, %s29
      %p40 = scmp.eq.s32.totalorder %s20, 0
      %p41 = por %p39, %p40
      %p42 = scmp.ne.s32.totalorder %s28, %s29
      %p43 = scmp.eq.s32.totalorder %s21, 1
      %p44 = por %p42, %p43
      %p46 = scmp.ne.s32.totalorder %s29, %s45
      %p47 = scmp.eq.s32.totalorder %s21, 0
      %p48 = por %p46, %p47
      %s50 = sadd.s32 %s49, 1
      %p53 = scmp.eq.s32.totalorder %s15, 1
      %p54 = scmp.ne.s32.totalorder %s49, %s51
      %p55 = scmp.eq.s32.totalorder %s15, 0
      %p56 = por %p54, %p55
      %p57 = scmp.ne.s32.totalorder %s49, %s51
      %p58 = scmp.eq.s32.totalorder %s20, 1
      %p59 = por %p57, %p58
      %p60 = scmp.ne.s32.totalorder %s51, %s52
      %p61 = scmp.eq.s32.totalorder %s20, 0
      %p62 = por %p60, %p61
      %p63 = scmp.ne.s32.totalorder %s51, %s52
      %p64 = scmp.eq.s32.totalorder %s21, 1
      %p65 = por %p63, %p64
      %p67 = scmp.ne.s32.totalorder %s52, %s66
      %p68 = scmp.eq.s32.totalorder %s21, 0
      %p69 = por %p67, %p68
      %s70 = ssub.s32 %s15, %s22
      %p71 = scmp.eq.s32.totalorder %s70, 0
      %s73 = sadd.s32 %s72, 1
      %s74 = scalar_select %p71, %s72, %s73
      %p77 = pneg %p71
      %p78 = scmp.eq.s32.totalorder %s15, 1
      %p79 = por %p77, %p78
      %p80 = scmp.ne.s32.totalorder %s72, %s75
      %p81 = scmp.eq.s32.totalorder %s15, 0
      %p82 = por %p80, %p81
      %p83 = scmp.ne.s32.totalorder %s72, %s75
      %p84 = scmp.eq.s32.totalorder %s20, 1
      %p85 = por %p83, %p84
      %p86 = scmp.ne.s32.totalorder %s75, %s76
      %p87 = scmp.eq.s32.totalorder %s20, 0
      %p88 = por %p86, %p87
      %p89 = scmp.ne.s32.totalorder %s75, %s76
      %p90 = scmp.eq.s32.totalorder %s21, 1
      %p91 = por %p89, %p90
      %p93 = scmp.ne.s32.totalorder %s76, %s92
      %p94 = scmp.eq.s32.totalorder %s21, 0
      %p95 = por %p93, %p94
      %p96 = scmp.le.s32.totalorder 1, %s15
      %p97 = scmp.lt.s32.totalorder %s15, 3
      %p98 = pnand %p96, %p97
      %p99 = pneg %p98
      // Predicated region
      $region9: #{tpu_custom_call.1} parent=5 // pred_check
        _
      $region10: #{tpu_custom_call.1} parent=5 // pred_check_branch
        %101 = sbr.rel (%p98) target = $region12
      $region11: #{tpu_custom_call.1} parent=5 // pred_region
        %s102 = ssub.s32 %s15, 1
        // Predicated region
        $region13: #{tpu_custom_call.1} parent=11 // pred_check
          %p103 = pneg %p62
        $region14: #{tpu_custom_call.1} parent=11 // pred_check_branch
          %105 = sbr.rel (%p103) target = $region16
        $region15: #{tpu_custom_call.1} parent=11 // pred_region
          %107 = vsyncadd [#allocation6], 0
          %s109 = sshll.u32 %s1, 4
          %s110 = int_to_ptr.hbm [resolvable:$true] %s109
          %s111 = sshll.u32 [#allocation5], 4
          %s112 = int_to_ptr.vmem [resolvable:$true] %s111
          %114 = dma.hbm_to_vmem [thread:$0]  %s110, 64, %s112, [#allocation6]
        $region16: #{tpu_custom_call.1} parent=11 // pred_fallthru
          _
      $region12: #{tpu_custom_call.1} parent=5 // pred_fallthru
        _
      %p115 = scmp.lt.s32.totalorder %s15, 2
      // Predicated region
      $region17: #{tpu_custom_call.1} parent=5 // pred_check
        %p116 = pneg %p115
      $region18: #{tpu_custom_call.1} parent=5 // pred_check_branch
        %118 = sbr.rel (%p116) target = $region20
      $region19: #{tpu_custom_call.1} parent=5 // pred_region
        // Predicated region
        $region21: #{tpu_custom_call.1} parent=19 // pred_check
          %p119 = pneg %p35
        $region22: #{tpu_custom_call.1} parent=19 // pred_check_branch
          %121 = sbr.rel (%p119) target = $region24
        $region23: #{tpu_custom_call.1} parent=19 // pred_region
          %s122 = sand.u32 %s25, 1
          %s123 = scalar_lea.sflag [#allocation3], %s122
          %s124 = sand.u32 %s25, 1
          %s125 = smul.addr %s124, 8
          %s126 = scalar_lea.vmem [#allocation2], %s125
          %128 = vsyncadd %s123, 0
          %s129 = smul.addr %s15, 4
          %s130 = smul.addr %s129, 2
          %s131 = scalar_lea.hbm %s0, %s130
          %s133 = sshll.u32 %s131, 4
          %s134 = int_to_ptr.hbm [resolvable:$true] %s133
          %s135 = sshll.u32 %s126, 4
          %s136 = int_to_ptr.vmem [resolvable:$true] %s135
          %138 = dma.hbm_to_vmem [thread:$0]  %s134, 128, %s136, %s123
        $region24: #{tpu_custom_call.1} parent=19 // pred_fallthru
          _
      $region20: #{tpu_custom_call.1} parent=5 // pred_fallthru
        _
      %p139 = scmp.le.s32.totalorder 1, %s15
      %p140 = scmp.lt.s32.totalorder %s15, 3
      %p141 = pnand %p139, %p140
      %p142 = pneg %p141
      // Predicated region
      $region25: #{tpu_custom_call.1} parent=5 // pred_check
        _
      $region26: #{tpu_custom_call.1} parent=5 // pred_check_branch
        %144 = sbr.rel (%p141) target = $region28
      $region27: #{tpu_custom_call.1} parent=5 // pred_region
        %s145 = ssub.s32 %s15, 1
        %s146 = sand.u32 %s28, 1
        %s147 = scalar_lea.sflag [#allocation3], %s146
        %s148 = sand.u32 %s28, 1
        %s149 = smul.addr %s148, 8
        %s150 = scalar_lea.vmem [#allocation2], %s149
        // Predicated region
        $region29: #{tpu_custom_call.1} parent=27 // pred_check
          %p151 = pneg %p41
        $region30: #{tpu_custom_call.1} parent=27 // pred_check_branch
          %153 = sbr.rel (%p151) target = $region32
        $region31: #{tpu_custom_call.1} parent=27 // pred_region
          %155 = dma.done %s147, 128
        $region32: #{tpu_custom_call.1} parent=27 // pred_fallthru
          _
        // Predicated region
        $region33: #{tpu_custom_call.1} parent=27 // pred_check
          %p156 = pneg %p62
        $region34: #{tpu_custom_call.1} parent=27 // pred_check_branch
          %158 = sbr.rel (%p156) target = $region36
        $region35: #{tpu_custom_call.1} parent=27 // pred_region
          %160 = dma.done [#allocation6], 64
        $region36: #{tpu_custom_call.1} parent=27 // pred_fallthru
          _
        %s161 = sand.u32 %s28, 1
        %s162 = scalar_lea.sflag [#allocation3], %s161
        %s163 = sand.u32 %s28, 1
        %s164 = smul.addr %s163, 8
        %s165 = scalar_lea.vmem [#allocation2], %s164
        %p166 = pneg %p41
        %p167 = pneg %p38
        %p168 = pneg %p62
        %p169 = pneg %p59
        %p170 = pneg %p88
        %p171 = pneg %p85
        %s172 = sand.u32 %s75, 1
        %s173 = scalar_lea.sflag [#allocation4], %s172
        %s174 = sand.u32 %s75, 1
        %s175 = smul.addr %s174, 24
        %s176 = scalar_lea.vmem [#allocation7], %s175
        %s177 = smul.u32 3, %s20
        %v179 = vld [vmem:[%s150] sm:$0xff]
        %181 = vst [vmem:[#allocation1] ss:$4 sm:$0xff] %v179
        %v182 = vld.sshfl [vmem:[#allocation1] sm:$0xff pattern:$0x73625140]
        %v183 = vld.sshfl [vmem:[#allocation1 + $0x8] sm:$0xff pattern:$0x73625140]
        %v184 = vld.sshfl [vmem:[#allocation1 + $0x10] sm:$0xff pattern:$0x73625140]
        %s185 = scalar_lea.vmem [#allocation1], 1
        %186 = vst [vmem:[%s185] ss:$4 sm:$0xff] %v179
        %v187 = vld.sshfl [vmem:[#allocation1] sm:$0xff pattern:$0x73625140]
        %v189 = vld.sshfl [vmem:[#allocation1 + $0x8] sm:$0xff pattern:$0x73625140]
        %v191 = vld.sshfl [vmem:[#allocation1 + $0x10] sm:$0xff pattern:$0x73625140]
        %v193 = vld.sshfl [vmem:[#allocation1 + $0x18] sm:$0xff pattern:$0x73625140]
        %195 = vrot.lane.b32.xlu0 %v187, 127
        %v196 = vpop.permute.xlu0 %195
        %197 = vrot.lane.b32.xlu0 %v189, 127
        %v198 = vpop.permute.xlu0 %197
        %199 = vrot.lane.b32.xlu0 %v191, 127
        %v200 = vpop.permute.xlu0 %199
        %201 = vrot.lane.b32.xlu0 %v193, 127
        %v202 = vpop.permute.xlu0 %201
        %vm203 = vcmask 1039360
        %v204 = vsel %vm203, %v196, %v198
        %v205 = vsel %vm203, %v198, %v200
        %v206 = vsel %vm203, %v200, %v202
        %s207 = scalar_lea.vmem [#allocation1], 2
        %208 = vst [vmem:[%s207] ss:$4 sm:$0xff] %v179
        %v209 = vld.sshfl [vmem:[#allocation1] sm:$0xff pattern:$0x73625140]
        %v211 = vld.sshfl [vmem:[#allocation1 + $0x8] sm:$0xff pattern:$0x73625140]
        %v213 = vld.sshfl [vmem:[#allocation1 + $0x10] sm:$0xff pattern:$0x73625140]
        %v215 = vld.sshfl [vmem:[#allocation1 + $0x18] sm:$0xff pattern:$0x73625140]
        %217 = vrot.lane.b32.xlu0 %v209, 126
        %v218 = vpop.permute.xlu0 %217
        %219 = vrot.lane.b32.xlu0 %v211, 126
        %v220 = vpop.permute.xlu0 %219
        %221 = vrot.lane.b32.xlu0 %v213, 126
        %v222 = vpop.permute.xlu0 %221
        %223 = vrot.lane.b32.xlu0 %v215, 126
        %v224 = vpop.permute.xlu0 %223
        %vm225 = vcmask 1031168
        %v226 = vsel %vm225, %v218, %v220
        %v227 = vsel %vm225, %v220, %v222
        %v228 = vsel %vm225, %v222, %v224
        %s229 = scalar_lea.vmem [#allocation1], 3
        %230 = vst [vmem:[%s229] ss:$4 sm:$0xff] %v179
        %v231 = vld.sshfl [vmem:[#allocation1] sm:$0xff pattern:$0x73625140]
        %v233 = vld.sshfl [vmem:[#allocation1 + $0x8] sm:$0xff pattern:$0x73625140]
        %v235 = vld.sshfl [vmem:[#allocation1 + $0x10] sm:$0xff pattern:$0x73625140]
        %v237 = vld.sshfl [vmem:[#allocation1 + $0x18] sm:$0xff pattern:$0x73625140]
        %239 = vrot.lane.b32.xlu0 %v231, 110
        %v240 = vpop.permute.xlu0 %239
        %241 = vrot.lane.b32.xlu0 %v233, 110
        %v242 = vpop.permute.xlu0 %241
        %243 = vrot.lane.b32.xlu0 %v235, 110
        %v244 = vpop.permute.xlu0 %243
        %245 = vrot.lane.b32.xlu0 %v237, 110
        %v246 = vpop.permute.xlu0 %245
        %vm247 = vcmask 900096
        %v248 = vsel %vm247, %v240, %v242
        %v249 = vsel %vm247, %v242, %v244
        %v250 = vsel %vm247, %v244, %v246
        %251 = vst [vmem:[#allocation1] ss:$4 sm:$0xff] %v179
        %v252 = vld.sshfl [vmem:[#allocation1] sm:$0xff pattern:$0x73625140]
        %v254 = vld.sshfl [vmem:[#allocation1 + $0x8] sm:$0xff pattern:$0x73625140]
        %v256 = vld.sshfl [vmem:[#allocation1 + $0x10] sm:$0xff pattern:$0x73625140]
        %v258 = vld.sshfl [vmem:[#allocation1 + $0x18] sm:$0xff pattern:$0x73625140]
        %260 = vrot.lane.b32.xlu0 %v252, 109
        %v261 = vpop.permute.xlu0 %260
        %262 = vrot.lane.b32.xlu0 %v254, 109
        %v263 = vpop.permute.xlu0 %262
        %264 = vrot.lane.b32.xlu0 %v256, 109
        %v265 = vpop.permute.xlu0 %264
        %266 = vrot.lane.b32.xlu0 %v258, 109
        %v267 = vpop.permute.xlu0 %266
        %vm268 = vcmask 891904
        %v269 = vsel %vm268, %v261, %v263
        %v270 = vsel %vm268, %v263, %v265
        %v271 = vsel %vm268, %v265, %v267
        %s272 = scalar_lea.vmem [#allocation1], 1
        %273 = vst [vmem:[%s272] ss:$4 sm:$0xff] %v179
        %v274 = vld.sshfl [vmem:[#allocation1] sm:$0xff pattern:$0x73625140]
        %v276 = vld.sshfl [vmem:[#allocation1 + $0x8] sm:$0xff pattern:$0x73625140]
        %v278 = vld.sshfl [vmem:[#allocation1 + $0x10] sm:$0xff pattern:$0x73625140]
        %v280 = vld.sshfl [vmem:[#allocation1 + $0x18] sm:$0xff pattern:$0x73625140]
        %282 = vrot.lane.b32.xlu0 %v274, 108
        %v283 = vpop.permute.xlu0 %282
        %284 = vrot.lane.b32.xlu0 %v276, 108
        %v285 = vpop.permute.xlu0 %284
        %286 = vrot.lane.b32.xlu0 %v278, 108
        %v287 = vpop.permute.xlu0 %286
        %288 = vrot.lane.b32.xlu0 %v280, 108
        %v289 = vpop.permute.xlu0 %288
        %vm290 = vcmask 883712
        %v291 = vsel %vm290, %v283, %v285
        %v292 = vsel %vm290, %v285, %v287
        %v293 = vsel %vm290, %v287, %v289
        %s294 = scalar_lea.vmem [#allocation1], 2
        %295 = vst [vmem:[%s294] ss:$4 sm:$0xff] %v179
        %v296 = vld.sshfl [vmem:[#allocation1] sm:$0xff pattern:$0x73625140]
        %v298 = vld.sshfl [vmem:[#allocation1 + $0x8] sm:$0xff pattern:$0x73625140]
        %v300 = vld.sshfl [vmem:[#allocation1 + $0x10] sm:$0xff pattern:$0x73625140]
        %v302 = vld.sshfl [vmem:[#allocation1 + $0x18] sm:$0xff pattern:$0x73625140]
        %304 = vrot.lane.b32.xlu0 %v296, 92
        %v305 = vpop.permute.xlu0 %304
        %306 = vrot.lane.b32.xlu0 %v298, 92
        %v307 = vpop.permute.xlu0 %306
        %308 = vrot.lane.b32.xlu0 %v300, 92
        %v309 = vpop.permute.xlu0 %308
        %310 = vrot.lane.b32.xlu0 %v302, 92
        %v311 = vpop.permute.xlu0 %310
        %vm312 = vcmask 752640
        %v313 = vsel %vm312, %v305, %v307
        %v314 = vsel %vm312, %v307, %v309
        %v315 = vsel %vm312, %v309, %v311
        %s316 = scalar_lea.vmem [#allocation1], 3
        %317 = vst [vmem:[%s316] ss:$4 sm:$0xff] %v179
        %v318 = vld.sshfl [vmem:[#allocation1] sm:$0xff pattern:$0x73625140]
        %v320 = vld.sshfl [vmem:[#allocation1 + $0x8] sm:$0xff pattern:$0x73625140]
        %v322 = vld.sshfl [vmem:[#allocation1 + $0x10] sm:$0xff pattern:$0x73625140]
        %v324 = vld.sshfl [vmem:[#allocation1 + $0x18] sm:$0xff pattern:$0x73625140]
        %326 = vrot.lane.b32.xlu0 %v318, 91
        %v327 = vpop.permute.xlu0 %326
        %328 = vrot.lane.b32.xlu0 %v320, 91
        %v329 = vpop.permute.xlu0 %328
        %330 = vrot.lane.b32.xlu0 %v322, 91
        %v331 = vpop.permute.xlu0 %330
        %332 = vrot.lane.b32.xlu0 %v324, 91
        %v333 = vpop.permute.xlu0 %332
        %vm334 = vcmask 744448
        %v335 = vsel %vm334, %v327, %v329
        %v336 = vsel %vm334, %v329, %v331
        %v337 = vsel %vm334, %v331, %v333
        %338 = vst [vmem:[#allocation1] ss:$4 sm:$0xff] %v179
        %v339 = vld.sshfl [vmem:[#allocation1] sm:$0xff pattern:$0x73625140]
        %v341 = vld.sshfl [vmem:[#allocation1 + $0x8] sm:$0xff pattern:$0x73625140]
        %v343 = vld.sshfl [vmem:[#allocation1 + $0x10] sm:$0xff pattern:$0x73625140]
        %v345 = vld.sshfl [vmem:[#allocation1 + $0x18] sm:$0xff pattern:$0x73625140]
        %347 = vrot.lane.b32.xlu0 %v339, 90
        %v348 = vpop.permute.xlu0 %347
        %349 = vrot.lane.b32.xlu0 %v341, 90
        %v350 = vpop.permute.xlu0 %349
        %351 = vrot.lane.b32.xlu0 %v343, 90
        %v352 = vpop.permute.xlu0 %351
        %353 = vrot.lane.b32.xlu0 %v345, 90
        %v354 = vpop.permute.xlu0 %353
        %vm355 = vcmask 736256
        %v356 = vsel %vm355, %v348, %v350
        %v357 = vsel %vm355, %v350, %v352
        %v358 = vsel %vm355, %v352, %v354
        %vm359 = vcmask 1041408
        %v361 = vsel %vm359, %v182, %v204
        %v363 = vsel %vm359, %v183, %v205
        %v365 = vsel %vm359, %v184, %v206
        %vm366 = vcmask 1043456
        %v368 = vsel %vm366, %v361, %v226
        %v370 = vsel %vm366, %v363, %v227
        %v372 = vsel %vm366, %v365, %v228
        %vm373 = vcmask 1045504
        %v375 = vsel %vm373, %v368, %v248
        %v378 = vsel %vm373, %v370, %v249
        %v381 = vsel %vm373, %v372, %v250
        %v385 = vsel %vm359, %v269, %v291
        %v388 = vsel %vm359, %v270, %v292
        %v391 = vsel %vm359, %v271, %v293
        %v393 = vsel %vm366, %v385, %v313
        %v395 = vsel %vm366, %v388, %v314
        %v397 = vsel %vm366, %v391, %v315
        %v399 = vsel %vm373, %v393, %v335
        %v402 = vsel %vm373, %v395, %v336
        %v405 = vsel %vm373, %v397, %v337
        %v407 = vld [vmem:[#allocation5] sm:$0xf]
        %vm408 = vcmask 293888
        %v410 = vsel %vm408, %v407, 0
        %v413 = vsel %vm359, %v356, 0
        %v416 = vsel %vm359, %v357, 0
        %v419 = vsel %vm359, %v358, 0
        %421 = vmatpush.bf16.msra.mxu0 0
        %422 = vmatpush.bf16.msra.mxu0 0
        %423 = vmatpush.bf16.msra.mxu0 0
        %424 = vmatpush.bf16.msra.mxu0 0
        %425 = vmatpush.bf16.msra.mxu0 0
        %426 = vmatpush.bf16.msra.mxu0 %v413
        %427 = vmatpush.bf16.msra.mxu0 %v399
        %428 = vmatpush.bf16.msra.mxu0 %v375
        %429 = vmatmul.bf16.gmra.mxu0 %v410
        %v430 = vpop.f32.mrf.mxu0
        %v431 = vadd.f32 0.0, %v430
        %v432 = vpop.f32.mrf.mxu0
        %433 = vdwg.mxu0
        %434 = vmatpush.bf16.msra.mxu0 0
        %435 = vmatpush.bf16.msra.mxu0 0
        %436 = vmatpush.bf16.msra.mxu0 0
        %437 = vmatpush.bf16.msra.mxu0 0
        %438 = vmatpush.bf16.msra.mxu0 0
        %439 = vmatpush.bf16.msra.mxu0 %v416
        %440 = vmatpush.bf16.msra.mxu0 %v402
        %441 = vmatpush.bf16.msra.mxu0 %v378
        %442 = vmatmul.bf16.gmra.mxu0 %v410
        %v443 = vpop.f32.mrf.mxu0
        %v444 = vadd.f32 0.0, %v443
        %v445 = vpop.f32.mrf.mxu0
        %446 = vdwg.mxu0
        %447 = vmatpush.bf16.msra.mxu0 0
        %448 = vmatpush.bf16.msra.mxu0 0
        %449 = vmatpush.bf16.msra.mxu0 0
        %450 = vmatpush.bf16.msra.mxu0 0
        %451 = vmatpush.bf16.msra.mxu0 0
        %452 = vmatpush.bf16.msra.mxu0 %v419
        %453 = vmatpush.bf16.msra.mxu0 %v405
        %454 = vmatpush.bf16.msra.mxu0 %v381
        %455 = vmatmul.bf16.gmra.mxu0 %v410
        %v456 = vpop.f32.mrf.mxu0
        %v457 = vadd.f32 0.0, %v456
        %v458 = vpop.f32.mrf.mxu0
        %459 = vdwg.mxu0
        %v460 = vmax.f32 %v431, 0.0
        %v461 = vmax.f32 %v444, 0.0
        %v462 = vmax.f32 %v457, 0.0
        %463 = vst [vmem:[%s176] sm:$0xff] %v460
        %464 = vst [vmem:[%s176 + $0x8] sm:$0xff] %v461
        %465 = vst [vmem:[%s176 + $0x10] sm:$0xff] %v462
        %s466 = sand.u32 %s75, 1
        %s467 = scalar_lea.sflag [#allocation4], %s466
        %s468 = sand.u32 %s75, 1
        %s469 = smul.addr %s468, 24
        %s470 = scalar_lea.vmem [#allocation7], %s469
        // Predicated region
        $region37: #{tpu_custom_call.1} parent=27 // pred_check
          %p471 = pneg %p85
        $region38: #{tpu_custom_call.1} parent=27 // pred_check_branch
          %473 = sbr.rel (%p471) target = $region40
        $region39: #{tpu_custom_call.1} parent=27 // pred_region
          %s474 = smul.u32 3, %s20
          %476 = vsyncadd %s467, 0
          %s477 = smul.addr %s474, 8
          %s478 = scalar_lea.hbm %s2, %s477
          %s480 = sshll.u32 %s470, 4
          %s481 = int_to_ptr.vmem [resolvable:$true] %s480
          %s482 = sshll.u32 %s478, 4
          %s483 = int_to_ptr.hbm [resolvable:$true] %s482
          %485 = dma.vmem_to_hbm [thread:$0]  %s481, 384, %s483, %s467
        $region40: #{tpu_custom_call.1} parent=27 // pred_fallthru
          _
      $region28: #{tpu_custom_call.1} parent=5 // pred_fallthru
        _
      %p486 = scmp.le.s32.totalorder 2, %s15
      // Predicated region
      $region41: #{tpu_custom_call.1} parent=5 // pred_check
        %p487 = pneg %p486
      $region42: #{tpu_custom_call.1} parent=5 // pred_check_branch
        %489 = sbr.rel (%p487) target = $region44
      $region43: #{tpu_custom_call.1} parent=5 // pred_region
        %s490 = ssub.s32 %s15, 2
        // Predicated region
        $region45: #{tpu_custom_call.1} parent=43 // pred_check
          %p491 = pneg %p91
        $region46: #{tpu_custom_call.1} parent=43 // pred_check_branch
          %493 = sbr.rel (%p491) target = $region48
        $region47: #{tpu_custom_call.1} parent=43 // pred_region
          %s494 = sand.u32 %s76, 1
          %s495 = scalar_lea.sflag [#allocation4], %s494
          %s496 = sand.u32 %s76, 1
          %s497 = smul.addr %s496, 24
          %s498 = scalar_lea.vmem [#allocation7], %s497
          %500 = dma.done %s495, 384
        $region48: #{tpu_custom_call.1} parent=43 // pred_fallthru
          _
      $region44: #{tpu_custom_call.1} parent=5 // pred_fallthru
        _
    $region6: #{tpu_custom_call.1} parent=1 // loop_footer
      %s19 = sadd.s32 1, %s15
    $region7: #{tpu_custom_call.1} parent=1 // loop_footer_branch
      %14 = sbr.rel target = $region3
    $region8: #{tpu_custom_call.1} parent=1 // loop_exit
      _
    %501 = vsyncpa [#allocation3], 1
    %s502 = scalar_lea.sflag [#allocation3], 1
    %503 = vsyncpa %s502, 1
    %504 = vsyncpa [#allocation6], 1
    %505 = vsyncpa [#allocation4], 1
    %s506 = scalar_lea.sflag [#allocation4], 1
    %507 = vsyncpa %s506, 1

</llo_original>
